<compile_context>
chip_gen: v7x
topology: tpu7x:2x2x1
jax: 0.10.0
libtpu: 0.0.40
codegen_flags: <defaults>
</compile_context>

<pallas_src>
import jax
import jax.numpy as jnp
from jax.experimental import pallas as pl
from jax.experimental.pallas import tpu as pltpu

IN_CH, OUT_CH, WIDTH = 2, 1, 8
BATCH = 8
T = 10.0          # integration horizon; steps=2 -> single RK step of dt = T
EPS = 1e-5        # BatchNorm1d eps
PAD = 128         # lane width of every packed parameter row / hidden state
WPAD = 128        # K rows kept for W_ode^T (padded lanes of z are exactly 0)

# Packed parameter slab row layout (all rows are PAD lanes wide).
R_W_ODE = 0                      # rows [0, WPAD): W_ode^T, data in [0:WIDTH, 0:WIDTH]
R_W_IN = WPAD                    # IN_CH rows: row c = W_in[:, c] on lanes [0:WIDTH]
R_B_IN = R_W_IN + IN_CH
R_B_ODE = R_B_IN + 1
R_GAMMA = R_B_ODE + 1
R_BETA = R_GAMMA + 1
R_W_HEAD = R_BETA + 1            # OUT_CH rows: row o = W_head[o, :] on lanes [0:WIDTH]
R_B_HEAD = R_W_HEAD + OUT_CH
_ROWS = R_B_HEAD + 1
N_ROWS = ((_ROWS + 7) // 8) * 8  # sublane-align the slab (-> 136 rows, 68 KiB)


def _softplus(x):
    # matches torch.nn.functional.softplus (beta=1, threshold=20)
    return jnp.where(x > 20.0, x, jnp.log1p(jnp.exp(jnp.minimum(x, 20.0))))


def _neural_ode_kernel(x_ref, p_ref, o_ref):
    x = x_ref[...]                                   # (B, IN_CH) f32, unpadded

    def row(r):
        # (1, PAD) parameter row; consumers rely on implicit jnp broadcasting,
        # which lowers to a single sublane-broadcast at the use site (no
        # long-lived broadcast vregs pinned across the RK chain).
        return p_ref[r:r + 1, :]

    def ode_func(z):
        # f(t, z) = BN(softplus(z @ W_ode^T + b_ode)); autonomous (t unused).
        # W_ode^T (16 vregs) is read here, per stage, so its live range is
        # one matmul instead of the whole RK chain.
        w_ode = p_ref[0:WPAD, :]                     # (128, 128); rows >= WIDTH are 0
        h = jnp.dot(z, w_ode, preferred_element_type=jnp.float32) + row(R_B_ODE)
        a = _softplus(h)
        # centered two-pass biased variance (matches torch BN, no cancellation)
        mean = jnp.mean(a, axis=0, keepdims=True)
        cen = a - mean
        var = jnp.mean(cen * cen, axis=0, keepdims=True)
        zn = cen * jax.lax.rsqrt(var + EPS)
        # gamma/beta rows are zero on padded lanes -> output padded lanes stay
        # exactly 0, keeping the 128-wide K contraction and the head lane
        # reduction exact.  pack_params() must preserve this invariant.
        return zn * row(R_GAMMA) + row(R_BETA)

    # in_layer: K = IN_CH = 2 -> two lane-broadcast FMAs, no MXU weight push.
    z0 = x[:, 0:1] * row(R_W_IN)
    for ci in range(1, IN_CH):
        z0 = z0 + x[:, ci:ci + 1] * row(R_W_IN + ci)
    z0 = z0 + row(R_B_IN)                            # (B, PAD); padded lanes 0

    # torchdiffeq fixed-grid 'rk4' (Kutta 3/8 rule), one step over [0, T].
    dt = jnp.float32(T)
    dt3 = jnp.float32(T / 3.0)                       # dt * 1/3
    dt8 = jnp.float32(T * 0.125)                     # dt * 1/8
    third = jnp.float32(1.0 / 3.0)

    k1 = ode_func(z0)
    k2 = ode_func(z0 + dt3 * k1)
    k3 = ode_func(z0 + dt * (k2 - third * k1))
    k4 = ode_func(z0 + dt * (k1 - k2 + k3))
    zT = z0 + dt8 * (k1 + 3.0 * (k2 + k3) + k4)

    # head: N = OUT_CH = 1 -> one lane reduction per output channel, no MXU.
    cols = [jnp.sum(zT * row(R_W_HEAD + o), axis=1, keepdims=True)
            for o in range(OUT_CH)]
    out = cols[0] if OUT_CH == 1 else jnp.concatenate(cols, axis=1)
    o_ref[...] = out + p_ref[R_B_HEAD:R_B_HEAD + 1, 0:OUT_CH]


def pack_params(p):
    """One-time host-side packing: 9 parameter tensors -> one (N_ROWS, PAD) slab.

    rows [0:WPAD)       W_ode^T      (real block [0:WIDTH, 0:WIDTH], rest 0)
    row  R_W_IN + c     W_in[:, c]   on lanes [0:WIDTH]
    row  R_B_IN         b_in         on lanes [0:WIDTH]
    row  R_B_ODE        b_ode        on lanes [0:WIDTH]
    row  R_GAMMA        gamma        on lanes [0:WIDTH]  (padded lanes MUST stay 0)
    row  R_BETA         beta         on lanes [0:WIDTH]  (padded lanes MUST stay 0)
    row  R_W_HEAD + o   W_head[o,:]  on lanes [0:WIDTH]
    row  R_B_HEAD       b_head       on lanes [0:OUT_CH]
    """
    pk = jnp.zeros((N_ROWS, PAD), jnp.float32)
    pk = pk.at[0:WIDTH, 0:WIDTH].set(p["W_ode"].T.astype(jnp.float32))
    for c in range(IN_CH):
        pk = pk.at[R_W_IN + c, 0:WIDTH].set(p["W_in"][:, c].astype(jnp.float32))
    pk = pk.at[R_B_IN, 0:WIDTH].set(p["b_in"].astype(jnp.float32))
    pk = pk.at[R_B_ODE, 0:WIDTH].set(p["b_ode"].astype(jnp.float32))
    pk = pk.at[R_GAMMA, 0:WIDTH].set(p["gamma"].astype(jnp.float32))
    pk = pk.at[R_BETA, 0:WIDTH].set(p["beta"].astype(jnp.float32))
    for o in range(OUT_CH):
        pk = pk.at[R_W_HEAD + o, 0:WIDTH].set(p["W_head"][o, :].astype(jnp.float32))
    pk = pk.at[R_B_HEAD, 0:OUT_CH].set(p["b_head"].astype(jnp.float32))
    return pk


# Cost estimate with post-shrink actuals (4 MXU stages + VPU/XLU misc).
_BYTES_ACCESSED = (BATCH * IN_CH + N_ROWS * PAD + BATCH * OUT_CH) * 4
_COST = pl.CostEstimate(
    flops=4 * 2 * BATCH * PAD * WPAD + 64 * BATCH * PAD,
    transcendentals=4 * BATCH * PAD * 2 + 4 * PAD,
    bytes_accessed=_BYTES_ACCESSED,
)


@jax.jit
def neural_ode_forward(x, p_pack):
    """x: [B, IN_CH] f32, packed params: [N_ROWS, PAD] f32 -> [B, OUT_CH] f32.

    The wrapper is a bare pallas_call: no input padding, no output slicing.
    """
    b = x.shape[0]
    vmem = pl.BlockSpec(memory_space=pltpu.MemorySpace.VMEM)
    return pl.pallas_call(
        _neural_ode_kernel,
        out_shape=jax.ShapeDtypeStruct((b, OUT_CH), jnp.float32),
        in_specs=[vmem, vmem],
        out_specs=vmem,
        compiler_params=pltpu.CompilerParams(vmem_limit_bytes=4 * 1024 * 1024),
        cost_estimate=_COST,
    )(x.astype(jnp.float32), p_pack)


def reference_forward(x, p):
    """Plain-JAX reference (mirrors the PyTorch module / torchdiffeq rk4)."""
    def f(z):
        a = _softplus(z @ p["W_ode"].T + p["b_ode"])
        m = a.mean(0, keepdims=True)
        v = ((a - m) ** 2).mean(0, keepdims=True)
        return (a - m) / jnp.sqrt(v + EPS) * p["gamma"] + p["beta"]

    z0 = x @ p["W_in"].T + p["b_in"]
    dt = T
    k1 = f(z0)
    k2 = f(z0 + dt * k1 / 3.0)
    k3 = f(z0 + dt * (k2 - k1 / 3.0))
    k4 = f(z0 + dt * (k1 - k2 + k3))
    zT = z0 + dt * 0.125 * (k1 + 3.0 * (k2 + k3) + k4)
    return zT @ p["W_head"].T + p["b_head"]


def init_params(key):
    """Deterministic init, PyTorch shapes: Linear weight [out, in], bias [out]."""
    ks = jax.random.split(key, 6)

    def lin(kw, kb, out_f, in_f):
        bound = 1.0 / jnp.sqrt(in_f)
        w = jax.random.uniform(kw, (out_f, in_f), jnp.float32, -bound, bound)
        b = jax.random.uniform(kb, (out_f,), jnp.float32, -bound, bound)
        return w, b

    W_in, b_in = lin(ks[0], ks[1], WIDTH, IN_CH)
    W_ode, b_ode = lin(ks[2], ks[3], WIDTH, WIDTH)
    W_head, b_head = lin(ks[4], ks[5], OUT_CH, WIDTH)
    return dict(
        W_in=W_in, b_in=b_in,
        W_ode=W_ode, b_ode=b_ode,
        gamma=jnp.ones((WIDTH,), jnp.float32),    # BatchNorm1d affine defaults
        beta=jnp.zeros((WIDTH,), jnp.float32),
        W_head=W_head, b_head=b_head,
    )


if __name__ == "__main__":
    key = jax.random.PRNGKey(0)
    kx, kp = jax.random.split(key)
    x = jax.random.normal(kx, (BATCH, IN_CH), jnp.float32)
    params = init_params(kp)

    # one-time parameter packing (hoisted out of the forward path)
    p_pack = jax.block_until_ready(pack_params(params))

    out = jax.block_until_ready(neural_ode_forward(x, p_pack))

    ref = reference_forward(x, params)
    assert out.shape == (BATCH, OUT_CH), out.shape
    assert jnp.allclose(out, ref, atol=1e-3, rtol=1e-3), (out, ref)
    print("KERNEL_OK")
</pallas_src>

<mosaic_0001>
module attributes {stable_mosaic.version = 11 : i64} {
  func.func @_neural_ode_kernel(%arg0: memref<8x2xf32, #tpu.memory_space<vmem>>, %arg1: memref<136x128xf32, #tpu.memory_space<vmem>>, %arg2: memref<8x1xf32, #tpu.memory_space<vmem>>) attributes {dimension_semantics = [], scalar_prefetch = 0 : i64, scratch_operands = 0 : i64, tpu.core_type = #tpu.core_type<tc>} {
    %c0 = arith.constant 0 : index
    %c0_0 = arith.constant 0 : index
    %0 = vector.load %arg0[%c0, %c0_0] : memref<8x2xf32, #tpu.memory_space<vmem>>, vector<8x2xf32>
    %1 = vector.extract_strided_slice %0 {offsets = [0, 0], sizes = [8, 1], strides = [1, 1]} : vector<8x2xf32> to vector<8x1xf32>
    %c128 = arith.constant 128 : index
    %c0_1 = arith.constant 0 : index
    %2 = vector.load %arg1[%c128, %c0_1] : memref<136x128xf32, #tpu.memory_space<vmem>>, vector<1x128xf32>
    %3 = vector.broadcast %1 : vector<8x1xf32> to vector<8x128xf32>
    %4 = vector.broadcast %2 : vector<1x128xf32> to vector<8x128xf32>
    %5 = arith.mulf %3, %4 : vector<8x128xf32>
    %6 = vector.extract_strided_slice %0 {offsets = [0, 1], sizes = [8, 1], strides = [1, 1]} : vector<8x2xf32> to vector<8x1xf32>
    %c129 = arith.constant 129 : index
    %c0_2 = arith.constant 0 : index
    %7 = vector.load %arg1[%c129, %c0_2] : memref<136x128xf32, #tpu.memory_space<vmem>>, vector<1x128xf32>
    %8 = vector.broadcast %6 : vector<8x1xf32> to vector<8x128xf32>
    %9 = vector.broadcast %7 : vector<1x128xf32> to vector<8x128xf32>
    %10 = arith.mulf %8, %9 : vector<8x128xf32>
    %11 = arith.addf %5, %10 : vector<8x128xf32>
    %c130 = arith.constant 130 : index
    %c0_3 = arith.constant 0 : index
    %12 = vector.load %arg1[%c130, %c0_3] : memref<136x128xf32, #tpu.memory_space<vmem>>, vector<1x128xf32>
    %13 = vector.broadcast %12 : vector<1x128xf32> to vector<8x128xf32>
    %14 = arith.addf %11, %13 : vector<8x128xf32>
    %c0_4 = arith.constant 0 : index
    %c0_5 = arith.constant 0 : index
    %15 = vector.load %arg1[%c0_4, %c0_5] : memref<136x128xf32, #tpu.memory_space<vmem>>, vector<128x128xf32>
    %cst = arith.constant dense<0.000000e+00> : vector<8x128xf32>
    %16 = tpu.matmul %14, %15, %cst {dimension_numbers = #tpu.dot_dimension_numbers<[1], [0], [0], [1], [0, 0, 1, 1], [], []>} : vector<8x128xf32>, vector<128x128xf32>, vector<8x128xf32> -> vector<8x128xf32>
    %c131 = arith.constant 131 : index
    %c0_6 = arith.constant 0 : index
    %17 = vector.load %arg1[%c131, %c0_6] : memref<136x128xf32, #tpu.memory_space<vmem>>, vector<1x128xf32>
    %18 = vector.broadcast %17 : vector<1x128xf32> to vector<8x128xf32>
    %19 = arith.addf %16, %18 : vector<8x128xf32>
    %cst_7 = arith.constant 2.000000e+01 : f32
    %20 = vector.broadcast %cst_7 : f32 to vector<8x128xf32>
    %21 = arith.cmpf ogt, %19, %20 : vector<8x128xf32>
    %cst_8 = arith.constant 2.000000e+01 : f32
    %22 = vector.broadcast %cst_8 : f32 to vector<8x128xf32>
    %23 = arith.minimumf %19, %22 : vector<8x128xf32>
    %24 = math.exp %23 : vector<8x128xf32>
    %25 = math.log1p %24 : vector<8x128xf32>
    %26 = arith.select %21, %19, %25 : vector<8x128xi1>, vector<8x128xf32>
    %cst_9 = arith.constant dense<0.000000e+00> : vector<128xf32>
    %27 = vector.multi_reduction <add>, %26, %cst_9 [0] : vector<8x128xf32> to vector<128xf32>
    %28 = vector.shape_cast %27 : vector<128xf32> to vector<1x128xf32>
    %cst_10 = arith.constant 8.000000e+00 : f32
    %29 = vector.broadcast %cst_10 : f32 to vector<1x128xf32>
    %30 = arith.divf %28, %29 : vector<1x128xf32>
    %31 = vector.broadcast %30 : vector<1x128xf32> to vector<8x128xf32>
    %32 = arith.subf %26, %31 : vector<8x128xf32>
    %33 = arith.mulf %32, %32 : vector<8x128xf32>
    %cst_11 = arith.constant dense<0.000000e+00> : vector<128xf32>
    %34 = vector.multi_reduction <add>, %33, %cst_11 [0] : vector<8x128xf32> to vector<128xf32>
    %35 = vector.shape_cast %34 : vector<128xf32> to vector<1x128xf32>
    %cst_12 = arith.constant 8.000000e+00 : f32
    %36 = vector.broadcast %cst_12 : f32 to vector<1x128xf32>
    %37 = arith.divf %35, %36 : vector<1x128xf32>
    %cst_13 = arith.constant 9.99999974E-6 : f32
    %38 = vector.broadcast %cst_13 : f32 to vector<1x128xf32>
    %39 = arith.addf %37, %38 : vector<1x128xf32>
    %40 = math.rsqrt %39 : vector<1x128xf32>
    %41 = vector.broadcast %40 : vector<1x128xf32> to vector<8x128xf32>
    %42 = arith.mulf %32, %41 : vector<8x128xf32>
    %c132 = arith.constant 132 : index
    %c0_14 = arith.constant 0 : index
    %43 = vector.load %arg1[%c132, %c0_14] : memref<136x128xf32, #tpu.memory_space<vmem>>, vector<1x128xf32>
    %44 = vector.broadcast %43 : vector<1x128xf32> to vector<8x128xf32>
    %45 = arith.mulf %42, %44 : vector<8x128xf32>
    %c133 = arith.constant 133 : index
    %c0_15 = arith.constant 0 : index
    %46 = vector.load %arg1[%c133, %c0_15] : memref<136x128xf32, #tpu.memory_space<vmem>>, vector<1x128xf32>
    %47 = vector.broadcast %46 : vector<1x128xf32> to vector<8x128xf32>
    %48 = arith.addf %45, %47 : vector<8x128xf32>
    %cst_16 = arith.constant 3.33333325 : f32
    %49 = vector.broadcast %cst_16 : f32 to vector<8x128xf32>
    %50 = arith.mulf %49, %48 : vector<8x128xf32>
    %51 = arith.addf %14, %50 : vector<8x128xf32>
    %c0_17 = arith.constant 0 : index
    %c0_18 = arith.constant 0 : index
    %52 = vector.load %arg1[%c0_17, %c0_18] : memref<136x128xf32, #tpu.memory_space<vmem>>, vector<128x128xf32>
    %cst_19 = arith.constant dense<0.000000e+00> : vector<8x128xf32>
    %53 = tpu.matmul %51, %52, %cst_19 {dimension_numbers = #tpu.dot_dimension_numbers<[1], [0], [0], [1], [0, 0, 1, 1], [], []>} : vector<8x128xf32>, vector<128x128xf32>, vector<8x128xf32> -> vector<8x128xf32>
    %c131_20 = arith.constant 131 : index
    %c0_21 = arith.constant 0 : index
    %54 = vector.load %arg1[%c131_20, %c0_21] : memref<136x128xf32, #tpu.memory_space<vmem>>, vector<1x128xf32>
    %55 = vector.broadcast %54 : vector<1x128xf32> to vector<8x128xf32>
    %56 = arith.addf %53, %55 : vector<8x128xf32>
    %cst_22 = arith.constant 2.000000e+01 : f32
    %57 = vector.broadcast %cst_22 : f32 to vector<8x128xf32>
    %58 = arith.cmpf ogt, %56, %57 : vector<8x128xf32>
    %cst_23 = arith.constant 2.000000e+01 : f32
    %59 = vector.broadcast %cst_23 : f32 to vector<8x128xf32>
    %60 = arith.minimumf %56, %59 : vector<8x128xf32>
    %61 = math.exp %60 : vector<8x128xf32>
    %62 = math.log1p %61 : vector<8x128xf32>
    %63 = arith.select %58, %56, %62 : vector<8x128xi1>, vector<8x128xf32>
    %cst_24 = arith.constant dense<0.000000e+00> : vector<128xf32>
    %64 = vector.multi_reduction <add>, %63, %cst_24 [0] : vector<8x128xf32> to vector<128xf32>
    %65 = vector.shape_cast %64 : vector<128xf32> to vector<1x128xf32>
    %cst_25 = arith.constant 8.000000e+00 : f32
    %66 = vector.broadcast %cst_25 : f32 to vector<1x128xf32>
    %67 = arith.divf %65, %66 : vector<1x128xf32>
    %68 = vector.broadcast %67 : vector<1x128xf32> to vector<8x128xf32>
    %69 = arith.subf %63, %68 : vector<8x128xf32>
    %70 = arith.mulf %69, %69 : vector<8x128xf32>
    %cst_26 = arith.constant dense<0.000000e+00> : vector<128xf32>
    %71 = vector.multi_reduction <add>, %70, %cst_26 [0] : vector<8x128xf32> to vector<128xf32>
    %72 = vector.shape_cast %71 : vector<128xf32> to vector<1x128xf32>
    %cst_27 = arith.constant 8.000000e+00 : f32
    %73 = vector.broadcast %cst_27 : f32 to vector<1x128xf32>
    %74 = arith.divf %72, %73 : vector<1x128xf32>
    %cst_28 = arith.constant 9.99999974E-6 : f32
    %75 = vector.broadcast %cst_28 : f32 to vector<1x128xf32>
    %76 = arith.addf %74, %75 : vector<1x128xf32>
    %77 = math.rsqrt %76 : vector<1x128xf32>
    %78 = vector.broadcast %77 : vector<1x128xf32> to vector<8x128xf32>
    %79 = arith.mulf %69, %78 : vector<8x128xf32>
    %c132_29 = arith.constant 132 : index
    %c0_30 = arith.constant 0 : index
    %80 = vector.load %arg1[%c132_29, %c0_30] : memref<136x128xf32, #tpu.memory_space<vmem>>, vector<1x128xf32>
    %81 = vector.broadcast %80 : vector<1x128xf32> to vector<8x128xf32>
    %82 = arith.mulf %79, %81 : vector<8x128xf32>
    %c133_31 = arith.constant 133 : index
    %c0_32 = arith.constant 0 : index
    %83 = vector.load %arg1[%c133_31, %c0_32] : memref<136x128xf32, #tpu.memory_space<vmem>>, vector<1x128xf32>
    %84 = vector.broadcast %83 : vector<1x128xf32> to vector<8x128xf32>
    %85 = arith.addf %82, %84 : vector<8x128xf32>
    %cst_33 = arith.constant 0.333333343 : f32
    %86 = vector.broadcast %cst_33 : f32 to vector<8x128xf32>
    %87 = arith.mulf %86, %48 : vector<8x128xf32>
    %88 = arith.subf %85, %87 : vector<8x128xf32>
    %cst_34 = arith.constant 1.000000e+01 : f32
    %89 = vector.broadcast %cst_34 : f32 to vector<8x128xf32>
    %90 = arith.mulf %89, %88 : vector<8x128xf32>
    %91 = arith.addf %14, %90 : vector<8x128xf32>
    %c0_35 = arith.constant 0 : index
    %c0_36 = arith.constant 0 : index
    %92 = vector.load %arg1[%c0_35, %c0_36] : memref<136x128xf32, #tpu.memory_space<vmem>>, vector<128x128xf32>
    %cst_37 = arith.constant dense<0.000000e+00> : vector<8x128xf32>
    %93 = tpu.matmul %91, %92, %cst_37 {dimension_numbers = #tpu.dot_dimension_numbers<[1], [0], [0], [1], [0, 0, 1, 1], [], []>} : vector<8x128xf32>, vector<128x128xf32>, vector<8x128xf32> -> vector<8x128xf32>
    %c131_38 = arith.constant 131 : index
    %c0_39 = arith.constant 0 : index
    %94 = vector.load %arg1[%c131_38, %c0_39] : memref<136x128xf32, #tpu.memory_space<vmem>>, vector<1x128xf32>
    %95 = vector.broadcast %94 : vector<1x128xf32> to vector<8x128xf32>
    %96 = arith.addf %93, %95 : vector<8x128xf32>
    %cst_40 = arith.constant 2.000000e+01 : f32
    %97 = vector.broadcast %cst_40 : f32 to vector<8x128xf32>
    %98 = arith.cmpf ogt, %96, %97 : vector<8x128xf32>
    %cst_41 = arith.constant 2.000000e+01 : f32
    %99 = vector.broadcast %cst_41 : f32 to vector<8x128xf32>
    %100 = arith.minimumf %96, %99 : vector<8x128xf32>
    %101 = math.exp %100 : vector<8x128xf32>
    %102 = math.log1p %101 : vector<8x128xf32>
    %103 = arith.select %98, %96, %102 : vector<8x128xi1>, vector<8x128xf32>
    %cst_42 = arith.constant dense<0.000000e+00> : vector<128xf32>
    %104 = vector.multi_reduction <add>, %103, %cst_42 [0] : vector<8x128xf32> to vector<128xf32>
    %105 = vector.shape_cast %104 : vector<128xf32> to vector<1x128xf32>
    %cst_43 = arith.constant 8.000000e+00 : f32
    %106 = vector.broadcast %cst_43 : f32 to vector<1x128xf32>
    %107 = arith.divf %105, %106 : vector<1x128xf32>
    %108 = vector.broadcast %107 : vector<1x128xf32> to vector<8x128xf32>
    %109 = arith.subf %103, %108 : vector<8x128xf32>
    %110 = arith.mulf %109, %109 : vector<8x128xf32>
    %cst_44 = arith.constant dense<0.000000e+00> : vector<128xf32>
    %111 = vector.multi_reduction <add>, %110, %cst_44 [0] : vector<8x128xf32> to vector<128xf32>
    %112 = vector.shape_cast %111 : vector<128xf32> to vector<1x128xf32>
    %cst_45 = arith.constant 8.000000e+00 : f32
    %113 = vector.broadcast %cst_45 : f32 to vector<1x128xf32>
    %114 = arith.divf %112, %113 : vector<1x128xf32>
    %cst_46 = arith.constant 9.99999974E-6 : f32
    %115 = vector.broadcast %cst_46 : f32 to vector<1x128xf32>
    %116 = arith.addf %114, %115 : vector<1x128xf32>
    %117 = math.rsqrt %116 : vector<1x128xf32>
    %118 = vector.broadcast %117 : vector<1x128xf32> to vector<8x128xf32>
    %119 = arith.mulf %109, %118 : vector<8x128xf32>
    %c132_47 = arith.constant 132 : index
    %c0_48 = arith.constant 0 : index
    %120 = vector.load %arg1[%c132_47, %c0_48] : memref<136x128xf32, #tpu.memory_space<vmem>>, vector<1x128xf32>
    %121 = vector.broadcast %120 : vector<1x128xf32> to vector<8x128xf32>
    %122 = arith.mulf %119, %121 : vector<8x128xf32>
    %c133_49 = arith.constant 133 : index
    %c0_50 = arith.constant 0 : index
    %123 = vector.load %arg1[%c133_49, %c0_50] : memref<136x128xf32, #tpu.memory_space<vmem>>, vector<1x128xf32>
    %124 = vector.broadcast %123 : vector<1x128xf32> to vector<8x128xf32>
    %125 = arith.addf %122, %124 : vector<8x128xf32>
    %126 = arith.subf %48, %85 : vector<8x128xf32>
    %127 = arith.addf %126, %125 : vector<8x128xf32>
    %cst_51 = arith.constant 1.000000e+01 : f32
    %128 = vector.broadcast %cst_51 : f32 to vector<8x128xf32>
    %129 = arith.mulf %128, %127 : vector<8x128xf32>
    %130 = arith.addf %14, %129 : vector<8x128xf32>
    %c0_52 = arith.constant 0 : index
    %c0_53 = arith.constant 0 : index
    %131 = vector.load %arg1[%c0_52, %c0_53] : memref<136x128xf32, #tpu.memory_space<vmem>>, vector<128x128xf32>
    %cst_54 = arith.constant dense<0.000000e+00> : vector<8x128xf32>
    %132 = tpu.matmul %130, %131, %cst_54 {dimension_numbers = #tpu.dot_dimension_numbers<[1], [0], [0], [1], [0, 0, 1, 1], [], []>} : vector<8x128xf32>, vector<128x128xf32>, vector<8x128xf32> -> vector<8x128xf32>
    %c131_55 = arith.constant 131 : index
    %c0_56 = arith.constant 0 : index
    %133 = vector.load %arg1[%c131_55, %c0_56] : memref<136x128xf32, #tpu.memory_space<vmem>>, vector<1x128xf32>
    %134 = vector.broadcast %133 : vector<1x128xf32> to vector<8x128xf32>
    %135 = arith.addf %132, %134 : vector<8x128xf32>
    %cst_57 = arith.constant 2.000000e+01 : f32
    %136 = vector.broadcast %cst_57 : f32 to vector<8x128xf32>
    %137 = arith.cmpf ogt, %135, %136 : vector<8x128xf32>
    %cst_58 = arith.constant 2.000000e+01 : f32
    %138 = vector.broadcast %cst_58 : f32 to vector<8x128xf32>
    %139 = arith.minimumf %135, %138 : vector<8x128xf32>
    %140 = math.exp %139 : vector<8x128xf32>
    %141 = math.log1p %140 : vector<8x128xf32>
    %142 = arith.select %137, %135, %141 : vector<8x128xi1>, vector<8x128xf32>
    %cst_59 = arith.constant dense<0.000000e+00> : vector<128xf32>
    %143 = vector.multi_reduction <add>, %142, %cst_59 [0] : vector<8x128xf32> to vector<128xf32>
    %144 = vector.shape_cast %143 : vector<128xf32> to vector<1x128xf32>
    %cst_60 = arith.constant 8.000000e+00 : f32
    %145 = vector.broadcast %cst_60 : f32 to vector<1x128xf32>
    %146 = arith.divf %144, %145 : vector<1x128xf32>
    %147 = vector.broadcast %146 : vector<1x128xf32> to vector<8x128xf32>
    %148 = arith.subf %142, %147 : vector<8x128xf32>
    %149 = arith.mulf %148, %148 : vector<8x128xf32>
    %cst_61 = arith.constant dense<0.000000e+00> : vector<128xf32>
    %150 = vector.multi_reduction <add>, %149, %cst_61 [0] : vector<8x128xf32> to vector<128xf32>
    %151 = vector.shape_cast %150 : vector<128xf32> to vector<1x128xf32>
    %cst_62 = arith.constant 8.000000e+00 : f32
    %152 = vector.broadcast %cst_62 : f32 to vector<1x128xf32>
    %153 = arith.divf %151, %152 : vector<1x128xf32>
    %cst_63 = arith.constant 9.99999974E-6 : f32
    %154 = vector.broadcast %cst_63 : f32 to vector<1x128xf32>
    %155 = arith.addf %153, %154 : vector<1x128xf32>
    %156 = math.rsqrt %155 : vector<1x128xf32>
    %157 = vector.broadcast %156 : vector<1x128xf32> to vector<8x128xf32>
    %158 = arith.mulf %148, %157 : vector<8x128xf32>
    %c132_64 = arith.constant 132 : index
    %c0_65 = arith.constant 0 : index
    %159 = vector.load %arg1[%c132_64, %c0_65] : memref<136x128xf32, #tpu.memory_space<vmem>>, vector<1x128xf32>
    %160 = vector.broadcast %159 : vector<1x128xf32> to vector<8x128xf32>
    %161 = arith.mulf %158, %160 : vector<8x128xf32>
    %c133_66 = arith.constant 133 : index
    %c0_67 = arith.constant 0 : index
    %162 = vector.load %arg1[%c133_66, %c0_67] : memref<136x128xf32, #tpu.memory_space<vmem>>, vector<1x128xf32>
    %163 = vector.broadcast %162 : vector<1x128xf32> to vector<8x128xf32>
    %164 = arith.addf %161, %163 : vector<8x128xf32>
    %165 = arith.addf %85, %125 : vector<8x128xf32>
    %cst_68 = arith.constant 3.000000e+00 : f32
    %166 = vector.broadcast %cst_68 : f32 to vector<8x128xf32>
    %167 = arith.mulf %166, %165 : vector<8x128xf32>
    %168 = arith.addf %48, %167 : vector<8x128xf32>
    %169 = arith.addf %168, %164 : vector<8x128xf32>
    %cst_69 = arith.constant 1.250000e+00 : f32
    %170 = vector.broadcast %cst_69 : f32 to vector<8x128xf32>
    %171 = arith.mulf %170, %169 : vector<8x128xf32>
    %172 = arith.addf %14, %171 : vector<8x128xf32>
    %c134 = arith.constant 134 : index
    %c0_70 = arith.constant 0 : index
    %173 = vector.load %arg1[%c134, %c0_70] : memref<136x128xf32, #tpu.memory_space<vmem>>, vector<1x128xf32>
    %174 = vector.broadcast %173 : vector<1x128xf32> to vector<8x128xf32>
    %175 = arith.mulf %172, %174 : vector<8x128xf32>
    %cst_71 = arith.constant dense<0.000000e+00> : vector<8xf32>
    %176 = vector.multi_reduction <add>, %175, %cst_71 [1] : vector<8x128xf32> to vector<8xf32>
    %177 = vector.shape_cast %176 : vector<8xf32> to vector<8x1xf32>
    %c135 = arith.constant 135 : index
    %c0_72 = arith.constant 0 : index
    %178 = vector.load %arg1[%c135, %c0_72] : memref<136x128xf32, #tpu.memory_space<vmem>>, vector<1x1xf32>
    %179 = vector.broadcast %178 : vector<1x1xf32> to vector<8x1xf32>
    %180 = arith.addf %177, %179 : vector<8x1xf32>
    %c0_73 = arith.constant 0 : index
    %c0_74 = arith.constant 0 : index
    %181 = vector.load %arg2[%c0_73, %c0_74] : memref<8x1xf32, #tpu.memory_space<vmem>>, vector<8x1xf32>
    tpu.vector_store %arg2[%c0_73, %c0_74], %180 {strides = array<i32>} : memref<8x1xf32, #tpu.memory_space<vmem>>, vector<8x1xf32>,
    return
  }
}

</mosaic_0001>

<llo_original>
// kernel: neural_ode_forward.1
$region0: #{neural_ode_forward.1}
  #allocation0 [shape = 'u32[]', space=smem, size = 0x4, offset = 0x4, fixed_abs, tag = 'smem constant byte address 0x4 - core index']
  #allocation1 [shape = 'u32[144,128]{1,0:T(1,128)}', space=vmem, size = 0x12000, scoped, tag = 'internal scratch']
  %s0 = inlined_call_operand.vmem [shape: f32[8,2], index: 0, kind: input, shape index: {}]
  %s1 = inlined_call_operand.hbm [shape: f32[136,128], index: 1, kind: input, shape index: {}]
  %s2 = inlined_call_operand.vmem [shape: f32[8,1], index: 2, kind: output, shape index: {}]
  %s3 = sld [smem:[#allocation0]]
  $region22: #{neural_ode_forward.1} parent=0
    _
  %s5 = ssub.s32 1, %s3
  %s6 = scalar_select 0, %s5, %s3
  $region1: #{neural_ode_forward.1} parent=0
    #allocation2 [shape = 'u8[69632]{0}', space=vmem, size = 0x11000, scoped, tag = 'input window, operand 1, single buffered']
    #allocation3 [shape = 's32[1]{0}', space=sflag, size = 0x4, scoped, tag = 'scoped memory for neural_ode_forward.1']
    %7 = vsyncpa [#allocation3], 0
    // Predicated region
    $region2: #{neural_ode_forward.1} parent=1 // pred_check
      _
    $region3: #{neural_ode_forward.1} parent=1 // pred_check_branch
      %9 = sbr.rel (0) target = $region5
    $region4: #{neural_ode_forward.1} parent=1 // pred_region
      _
    $region5: #{neural_ode_forward.1} parent=1 // pred_fallthru
      _
    // Predicated region
    $region6: #{neural_ode_forward.1} parent=1 // pred_check
      _
    $region7: #{neural_ode_forward.1} parent=1 // pred_check_branch
      %11 = sbr.rel (0) target = $region9
    $region8: #{neural_ode_forward.1} parent=1 // pred_region
      %s13 = ssub.s32 2176, 2176
      %14 = vsyncadd [#allocation3], %s13
      %s15 = sshll.u32 [#allocation2], 4
      %s16 = int_to_ptr.vmem [resolvable:$true] %s15
      %21 = dma.hbm_to_vmem [thread:$0]  %s1, 2176, %s16, [#allocation3], 128, 128, 8
    $region9: #{neural_ode_forward.1} parent=1 // pred_fallthru
      _
    // Predicated region
    $region10: #{neural_ode_forward.1} parent=1 // pred_check
      _
    $region11: #{neural_ode_forward.1} parent=1 // pred_check_branch
      %23 = sbr.rel (0) target = $region13
    $region12: #{neural_ode_forward.1} parent=1 // pred_region
      %24 = dma.done [#allocation3], 2176
    $region13: #{neural_ode_forward.1} parent=1 // pred_fallthru
      _
    %v25 = vld [vmem:[%s0] sm:$0xff]
    %v26 = vld [vmem:[#allocation2 + $0x80] sm:$0x1]
    %28 = vset.pattern.permute.xlu0 0
    %29 = vperm.xlu0 %28, %v25
    %v30 = vpop.permute.xlu0 %29
    %v32 = vlaneseq
    %v33 = vshrl.u32 %v32, 7
    %v34 = vsub.s32 0, %v33
    %v35 = vrot.slane %v26, %v34
    %v36 = vmul.f32 %v30, %v35
    %v37 = vld [vmem:[#allocation2 + $0x81] sm:$0x1]
    %38 = vset.pattern.permute.xlu0 1
    %39 = vperm.xlu0 %38, %v25
    %v40 = vpop.permute.xlu0 %39
    %v42 = vlaneseq
    %v43 = vshrl.u32 %v42, 7
    %v44 = vsub.s32 0, %v43
    %v45 = vrot.slane %v37, %v44
    %v46 = vmul.f32 %v40, %v45
    %v47 = vadd.f32 %v36, %v46
    %v48 = vld [vmem:[#allocation2 + $0x82] sm:$0x1]
    %v49 = vlaneseq
    %v50 = vshrl.u32 %v49, 7
    %v51 = vsub.s32 0, %v50
    %v52 = vrot.slane %v48, %v51
    %v53 = vadd.f32 %v47, %v52
    %v54 = vld [vmem:[#allocation2] sm:$0xff]
    %v55 = vld [vmem:[#allocation2 + $0x8] sm:$0xff]
    %v56 = vld [vmem:[#allocation2 + $0x10] sm:$0xff]
    %v57 = vld [vmem:[#allocation2 + $0x18] sm:$0xff]
    %v58 = vld [vmem:[#allocation2 + $0x20] sm:$0xff]
    %v59 = vld [vmem:[#allocation2 + $0x28] sm:$0xff]
    %v60 = vld [vmem:[#allocation2 + $0x30] sm:$0xff]
    %v61 = vld [vmem:[#allocation2 + $0x38] sm:$0xff]
    %v62 = vld [vmem:[#allocation2 + $0x40] sm:$0xff]
    %v63 = vld [vmem:[#allocation2 + $0x48] sm:$0xff]
    %v64 = vld [vmem:[#allocation2 + $0x50] sm:$0xff]
    %v65 = vld [vmem:[#allocation2 + $0x58] sm:$0xff]
    %v66 = vld [vmem:[#allocation2 + $0x60] sm:$0xff]
    %v67 = vld [vmem:[#allocation2 + $0x68] sm:$0xff]
    %v68 = vld [vmem:[#allocation2 + $0x70] sm:$0xff]
    %v69 = vld [vmem:[#allocation2 + $0x78] sm:$0xff]
    %v70 = vld [vmem:[#allocation2 + $0x83] sm:$0x1]
    %v71 = vlaneseq
    %v72 = vshrl.u32 %v71, 7
    %v73 = vsub.s32 0, %v72
    %v74 = vrot.slane %v70, %v73
    %75 = vmatprep.subr.mxu0 0.0
    %76 = vmatpush1.msra.mxu0 %v54
    %77 = vmatprep.subr.mxu0 0.0
    %78 = vmatpush1.msra.mxu0 %v55
    %79 = vmatprep.subr.mxu0 0.0
    %80 = vmatpush1.msra.mxu0 %v56
    %81 = vmatprep.subr.mxu0 0.0
    %82 = vmatpush1.msra.mxu0 %v57
    %83 = vmatprep.subr.mxu0 0.0
    %84 = vmatpush1.msra.mxu0 %v58
    %85 = vmatprep.subr.mxu0 0.0
    %86 = vmatpush1.msra.mxu0 %v59
    %87 = vmatprep.subr.mxu0 0.0
    %88 = vmatpush1.msra.mxu0 %v60
    %89 = vmatprep.subr.mxu0 0.0
    %90 = vmatpush1.msra.mxu0 %v61
    %91 = vmatprep.subr.mxu0 0.0
    %92 = vmatpush1.msra.mxu0 %v62
    %93 = vmatprep.subr.mxu0 0.0
    %94 = vmatpush1.msra.mxu0 %v63
    %95 = vmatprep.subr.mxu0 0.0
    %96 = vmatpush1.msra.mxu0 %v64
    %97 = vmatprep.subr.mxu0 0.0
    %98 = vmatpush1.msra.mxu0 %v65
    %99 = vmatprep.subr.mxu0 0.0
    %100 = vmatpush1.msra.mxu0 %v66
    %101 = vmatprep.subr.mxu0 0.0
    %102 = vmatpush1.msra.mxu0 %v67
    %103 = vmatprep.subr.mxu0 0.0
    %104 = vmatpush1.msra.mxu0 %v68
    %105 = vmatprep.subr.mxu0 0.0
    %106 = vmatpush1.msra.mxu0 %v69
    %107 = vmatprep.subr.mxu0 0.0
    %108 = vmatpush1.msra.mxu0 0.0
    %109 = vmatprep.subr.mxu0 0.0
    %110 = vmatpush1.msra.mxu0 0.0
    %111 = vmatprep.subr.mxu0 0.0
    %112 = vmatpush1.msra.mxu0 0.0
    %113 = vmatprep.subr.mxu0 0.0
    %114 = vmatpush1.msra.mxu0 0.0
    %115 = vmatprep.subr.mxu0 0.0
    %116 = vmatpush1.msra.mxu0 0.0
    %117 = vmatprep.subr.mxu0 0.0
    %118 = vmatpush1.msra.mxu0 0.0
    %119 = vmatprep.subr.mxu0 0.0
    %120 = vmatpush1.msra.mxu0 0.0
    %121 = vmatprep.subr.mxu0 0.0
    %122 = vmatpush1.msra.mxu0 0.0
    %123 = vmatprep.subr.mxu0 0.0
    %124 = vmatpush1.msra.mxu0 0.0
    %125 = vmatprep.subr.mxu0 0.0
    %126 = vmatpush1.msra.mxu0 0.0
    %127 = vmatprep.subr.mxu0 0.0
    %128 = vmatpush1.msra.mxu0 0.0
    %129 = vmatprep.subr.mxu0 0.0
    %130 = vmatpush1.msra.mxu0 0.0
    %131 = vmatprep.subr.mxu0 0.0
    %132 = vmatpush1.msra.mxu0 0.0
    %133 = vmatprep.subr.mxu0 0.0
    %134 = vmatpush1.msra.mxu0 0.0
    %135 = vmatprep.subr.mxu0 0.0
    %136 = vmatpush1.msra.mxu0 0.0
    %137 = vmatprep.subr.mxu0 0.0
    %138 = vmatpush1.msra.mxu0 0.0
    %139 = vmatprep.mubr.f32.mxu0 0.0
    %140 = vmatmul.mubr.f32.gmra.mrb[0].mxu0 %v53
    %v141 = vpop.f32.mrb[0].mxu0
    %v142 = vadd.f32 %v74, %v141
    %v143 = vpop.f32.mrb[0].mxu0
    %144 = vdwg.mxu0
    %vm145 = vcmp.gt.f32.partialorder %v142, 20.0
    %v146 = vmin.f32 %v142, 20.0
    %v147 = vmul.f32 %v146, 1.442695
    %v148 = vpow.pop %v147
    %v149 = vadd.f32 %v148, 1.0
    %v150 = vlog2.pop %v149
    %v151 = vmul.f32 %v150, 0.6931472
    %v152 = vmul.f32 -0.5, %v148
    %v153 = vadd.f32 %v152, 1.0
    %v154 = vmul.f32 %v153, %v148
    %v155 = vand.u32 2147483647, %v148
    %vm156 = vcmp.lt.f32.partialorder %v155, 0.0004427343
    %v157 = vsel %vm156, %v154, %v151
    %v158 = vsel %vm145, %v142, %v157
    %v159 = vrot.slane %v158, 4
    %v160 = vadd.f32 %v158, %v159
    %v161 = vrot.slane %v160, 2
    %v162 = vadd.f32 %v160, %v161
    %v163 = vrot.slane %v162, 1
    %v164 = vadd.f32 %v162, %v163
    %v165 = vrcp.pop 8.0
    %v166 = vmul.f32 %v164, %v165
    %v167 = vsub.f32 %v158, %v166
    %v168 = vmul.f32 %v167, %v167
    %v169 = vrot.slane %v168, 4
    %v170 = vadd.f32 %v168, %v169
    %v171 = vrot.slane %v170, 2
    %v172 = vadd.f32 %v170, %v171
    %v173 = vrot.slane %v172, 1
    %v174 = vadd.f32 %v172, %v173
    %v175 = vmul.f32 %v174, %v165
    %v176 = vadd.f32 %v175, 1e-05
    %v177 = vrsqrt.pop %v176
    %v178 = vmul.f32 %v167, %v177
    %v179 = vld [vmem:[#allocation2 + $0x84] sm:$0x1]
    %v180 = vlaneseq
    %v181 = vshrl.u32 %v180, 7
    %v182 = vsub.s32 0, %v181
    %v183 = vrot.slane %v179, %v182
    %v184 = vmul.f32 %v178, %v183
    %v185 = vld [vmem:[#allocation2 + $0x85] sm:$0x1]
    %v186 = vlaneseq
    %v187 = vshrl.u32 %v186, 7
    %v188 = vsub.s32 0, %v187
    %v189 = vrot.slane %v185, %v188
    %v190 = vadd.f32 %v184, %v189
    %v191 = vmul.f32 %v190, 3.3333333
    %v192 = vadd.f32 %v53, %v191
    %193 = vmatprep.subr.mxu0 0.0
    %194 = vmatpush1.msra.mxu0 %v54
    %195 = vmatprep.subr.mxu0 0.0
    %196 = vmatpush1.msra.mxu0 %v55
    %197 = vmatprep.subr.mxu0 0.0
    %198 = vmatpush1.msra.mxu0 %v56
    %199 = vmatprep.subr.mxu0 0.0
    %200 = vmatpush1.msra.mxu0 %v57
    %201 = vmatprep.subr.mxu0 0.0
    %202 = vmatpush1.msra.mxu0 %v58
    %203 = vmatprep.subr.mxu0 0.0
    %204 = vmatpush1.msra.mxu0 %v59
    %205 = vmatprep.subr.mxu0 0.0
    %206 = vmatpush1.msra.mxu0 %v60
    %207 = vmatprep.subr.mxu0 0.0
    %208 = vmatpush1.msra.mxu0 %v61
    %209 = vmatprep.subr.mxu0 0.0
    %210 = vmatpush1.msra.mxu0 %v62
    %211 = vmatprep.subr.mxu0 0.0
    %212 = vmatpush1.msra.mxu0 %v63
    %213 = vmatprep.subr.mxu0 0.0
    %214 = vmatpush1.msra.mxu0 %v64
    %215 = vmatprep.subr.mxu0 0.0
    %216 = vmatpush1.msra.mxu0 %v65
    %217 = vmatprep.subr.mxu0 0.0
    %218 = vmatpush1.msra.mxu0 %v66
    %219 = vmatprep.subr.mxu0 0.0
    %220 = vmatpush1.msra.mxu0 %v67
    %221 = vmatprep.subr.mxu0 0.0
    %222 = vmatpush1.msra.mxu0 %v68
    %223 = vmatprep.subr.mxu0 0.0
    %224 = vmatpush1.msra.mxu0 %v69
    %225 = vmatprep.subr.mxu0 0.0
    %226 = vmatpush1.msra.mxu0 0.0
    %227 = vmatprep.subr.mxu0 0.0
    %228 = vmatpush1.msra.mxu0 0.0
    %229 = vmatprep.subr.mxu0 0.0
    %230 = vmatpush1.msra.mxu0 0.0
    %231 = vmatprep.subr.mxu0 0.0
    %232 = vmatpush1.msra.mxu0 0.0
    %233 = vmatprep.subr.mxu0 0.0
    %234 = vmatpush1.msra.mxu0 0.0
    %235 = vmatprep.subr.mxu0 0.0
    %236 = vmatpush1.msra.mxu0 0.0
    %237 = vmatprep.subr.mxu0 0.0
    %238 = vmatpush1.msra.mxu0 0.0
    %239 = vmatprep.subr.mxu0 0.0
    %240 = vmatpush1.msra.mxu0 0.0
    %241 = vmatprep.subr.mxu0 0.0
    %242 = vmatpush1.msra.mxu0 0.0
    %243 = vmatprep.subr.mxu0 0.0
    %244 = vmatpush1.msra.mxu0 0.0
    %245 = vmatprep.subr.mxu0 0.0
    %246 = vmatpush1.msra.mxu0 0.0
    %247 = vmatprep.subr.mxu0 0.0
    %248 = vmatpush1.msra.mxu0 0.0
    %249 = vmatprep.subr.mxu0 0.0
    %250 = vmatpush1.msra.mxu0 0.0
    %251 = vmatprep.subr.mxu0 0.0
    %252 = vmatpush1.msra.mxu0 0.0
    %253 = vmatprep.subr.mxu0 0.0
    %254 = vmatpush1.msra.mxu0 0.0
    %255 = vmatprep.subr.mxu0 0.0
    %256 = vmatpush1.msra.mxu0 0.0
    %257 = vmatprep.mubr.f32.mxu0 0.0
    %258 = vmatmul.mubr.f32.gmra.mrb[0].mxu0 %v192
    %v259 = vpop.f32.mrb[0].mxu0
    %v260 = vadd.f32 %v74, %v259
    %v261 = vpop.f32.mrb[0].mxu0
    %262 = vdwg.mxu0
    %vm263 = vcmp.gt.f32.partialorder %v260, 20.0
    %v264 = vmin.f32 %v260, 20.0
    %v265 = vmul.f32 %v264, 1.442695
    %v266 = vpow.pop %v265
    %v267 = vadd.f32 %v266, 1.0
    %v268 = vlog2.pop %v267
    %v269 = vmul.f32 %v268, 0.6931472
    %v270 = vmul.f32 -0.5, %v266
    %v271 = vadd.f32 %v270, 1.0
    %v272 = vmul.f32 %v271, %v266
    %v273 = vand.u32 2147483647, %v266
    %vm274 = vcmp.lt.f32.partialorder %v273, 0.0004427343
    %v275 = vsel %vm274, %v272, %v269
    %v276 = vsel %vm263, %v260, %v275
    %v277 = vrot.slane %v276, 4
    %v278 = vadd.f32 %v276, %v277
    %v279 = vrot.slane %v278, 2
    %v280 = vadd.f32 %v278, %v279
    %v281 = vrot.slane %v280, 1
    %v282 = vadd.f32 %v280, %v281
    %v283 = vmul.f32 %v282, %v165
    %v284 = vsub.f32 %v276, %v283
    %v285 = vmul.f32 %v284, %v284
    %v286 = vrot.slane %v285, 4
    %v287 = vadd.f32 %v285, %v286
    %v288 = vrot.slane %v287, 2
    %v289 = vadd.f32 %v287, %v288
    %v290 = vrot.slane %v289, 1
    %v291 = vadd.f32 %v289, %v290
    %v292 = vmul.f32 %v291, %v165
    %v293 = vadd.f32 %v292, 1e-05
    %v294 = vrsqrt.pop %v293
    %v295 = vmul.f32 %v284, %v294
    %v296 = vmul.f32 %v295, %v183
    %v297 = vadd.f32 %v296, %v189
    %v298 = vmul.f32 %v190, 0.33333334
    %v299 = vsub.f32 %v297, %v298
    %v300 = vmul.f32 %v299, 10.0
    %v301 = vadd.f32 %v53, %v300
    %302 = vmatprep.subr.mxu0 0.0
    %303 = vmatpush1.msra.mxu0 %v54
    %304 = vmatprep.subr.mxu0 0.0
    %305 = vmatpush1.msra.mxu0 %v55
    %306 = vmatprep.subr.mxu0 0.0
    %307 = vmatpush1.msra.mxu0 %v56
    %308 = vmatprep.subr.mxu0 0.0
    %309 = vmatpush1.msra.mxu0 %v57
    %310 = vmatprep.subr.mxu0 0.0
    %311 = vmatpush1.msra.mxu0 %v58
    %312 = vmatprep.subr.mxu0 0.0
    %313 = vmatpush1.msra.mxu0 %v59
    %314 = vmatprep.subr.mxu0 0.0
    %315 = vmatpush1.msra.mxu0 %v60
    %316 = vmatprep.subr.mxu0 0.0
    %317 = vmatpush1.msra.mxu0 %v61
    %318 = vmatprep.subr.mxu0 0.0
    %319 = vmatpush1.msra.mxu0 %v62
    %320 = vmatprep.subr.mxu0 0.0
    %321 = vmatpush1.msra.mxu0 %v63
    %322 = vmatprep.subr.mxu0 0.0
    %323 = vmatpush1.msra.mxu0 %v64
    %324 = vmatprep.subr.mxu0 0.0
    %325 = vmatpush1.msra.mxu0 %v65
    %326 = vmatprep.subr.mxu0 0.0
    %327 = vmatpush1.msra.mxu0 %v66
    %328 = vmatprep.subr.mxu0 0.0
    %329 = vmatpush1.msra.mxu0 %v67
    %330 = vmatprep.subr.mxu0 0.0
    %331 = vmatpush1.msra.mxu0 %v68
    %332 = vmatprep.subr.mxu0 0.0
    %333 = vmatpush1.msra.mxu0 %v69
    %334 = vmatprep.subr.mxu0 0.0
    %335 = vmatpush1.msra.mxu0 0.0
    %336 = vmatprep.subr.mxu0 0.0
    %337 = vmatpush1.msra.mxu0 0.0
    %338 = vmatprep.subr.mxu0 0.0
    %339 = vmatpush1.msra.mxu0 0.0
    %340 = vmatprep.subr.mxu0 0.0
    %341 = vmatpush1.msra.mxu0 0.0
    %342 = vmatprep.subr.mxu0 0.0
    %343 = vmatpush1.msra.mxu0 0.0
    %344 = vmatprep.subr.mxu0 0.0
    %345 = vmatpush1.msra.mxu0 0.0
    %346 = vmatprep.subr.mxu0 0.0
    %347 = vmatpush1.msra.mxu0 0.0
    %348 = vmatprep.subr.mxu0 0.0
    %349 = vmatpush1.msra.mxu0 0.0
    %350 = vmatprep.subr.mxu0 0.0
    %351 = vmatpush1.msra.mxu0 0.0
    %352 = vmatprep.subr.mxu0 0.0
    %353 = vmatpush1.msra.mxu0 0.0
    %354 = vmatprep.subr.mxu0 0.0
    %355 = vmatpush1.msra.mxu0 0.0
    %356 = vmatprep.subr.mxu0 0.0
    %357 = vmatpush1.msra.mxu0 0.0
    %358 = vmatprep.subr.mxu0 0.0
    %359 = vmatpush1.msra.mxu0 0.0
    %360 = vmatprep.subr.mxu0 0.0
    %361 = vmatpush1.msra.mxu0 0.0
    %362 = vmatprep.subr.mxu0 0.0
    %363 = vmatpush1.msra.mxu0 0.0
    %364 = vmatprep.subr.mxu0 0.0
    %365 = vmatpush1.msra.mxu0 0.0
    %366 = vmatprep.mubr.f32.mxu0 0.0
    %367 = vmatmul.mubr.f32.gmra.mrb[0].mxu0 %v301
    %v368 = vpop.f32.mrb[0].mxu0
    %v369 = vadd.f32 %v74, %v368
    %v370 = vpop.f32.mrb[0].mxu0
    %371 = vdwg.mxu0
    %vm372 = vcmp.gt.f32.partialorder %v369, 20.0
    %v373 = vmin.f32 %v369, 20.0
    %v374 = vmul.f32 %v373, 1.442695
    %v375 = vpow.pop %v374
    %v376 = vadd.f32 %v375, 1.0
    %v377 = vlog2.pop %v376
    %v378 = vmul.f32 %v377, 0.6931472
    %v379 = vmul.f32 -0.5, %v375
    %v380 = vadd.f32 %v379, 1.0
    %v381 = vmul.f32 %v380, %v375
    %v382 = vand.u32 2147483647, %v375
    %vm383 = vcmp.lt.f32.partialorder %v382, 0.0004427343
    %v384 = vsel %vm383, %v381, %v378
    %v385 = vsel %vm372, %v369, %v384
    %v386 = vrot.slane %v385, 4
    %v387 = vadd.f32 %v385, %v386
    %v388 = vrot.slane %v387, 2
    %v389 = vadd.f32 %v387, %v388
    %v390 = vrot.slane %v389, 1
    %v391 = vadd.f32 %v389, %v390
    %v392 = vmul.f32 %v391, %v165
    %v393 = vsub.f32 %v385, %v392
    %v394 = vmul.f32 %v393, %v393
    %v395 = vrot.slane %v394, 4
    %v396 = vadd.f32 %v394, %v395
    %v397 = vrot.slane %v396, 2
    %v398 = vadd.f32 %v396, %v397
    %v399 = vrot.slane %v398, 1
    %v400 = vadd.f32 %v398, %v399
    %v401 = vmul.f32 %v400, %v165
    %v402 = vadd.f32 %v401, 1e-05
    %v403 = vrsqrt.pop %v402
    %v404 = vmul.f32 %v393, %v403
    %v405 = vmul.f32 %v404, %v183
    %v406 = vadd.f32 %v405, %v189
    %v407 = vsub.f32 %v190, %v297
    %v408 = vadd.f32 %v407, %v406
    %v409 = vmul.f32 %v408, 10.0
    %v410 = vadd.f32 %v53, %v409
    %411 = vmatprep.subr.mxu0 0.0
    %412 = vmatpush1.msra.mxu0 %v54
    %413 = vmatprep.subr.mxu0 0.0
    %414 = vmatpush1.msra.mxu0 %v55
    %415 = vmatprep.subr.mxu0 0.0
    %416 = vmatpush1.msra.mxu0 %v56
    %417 = vmatprep.subr.mxu0 0.0
    %418 = vmatpush1.msra.mxu0 %v57
    %419 = vmatprep.subr.mxu0 0.0
    %420 = vmatpush1.msra.mxu0 %v58
    %421 = vmatprep.subr.mxu0 0.0
    %422 = vmatpush1.msra.mxu0 %v59
    %423 = vmatprep.subr.mxu0 0.0
    %424 = vmatpush1.msra.mxu0 %v60
    %425 = vmatprep.subr.mxu0 0.0
    %426 = vmatpush1.msra.mxu0 %v61
    %427 = vmatprep.subr.mxu0 0.0
    %428 = vmatpush1.msra.mxu0 %v62
    %429 = vmatprep.subr.mxu0 0.0
    %430 = vmatpush1.msra.mxu0 %v63
    %431 = vmatprep.subr.mxu0 0.0
    %432 = vmatpush1.msra.mxu0 %v64
    %433 = vmatprep.subr.mxu0 0.0
    %434 = vmatpush1.msra.mxu0 %v65
    %435 = vmatprep.subr.mxu0 0.0
    %436 = vmatpush1.msra.mxu0 %v66
    %437 = vmatprep.subr.mxu0 0.0
    %438 = vmatpush1.msra.mxu0 %v67
    %439 = vmatprep.subr.mxu0 0.0
    %440 = vmatpush1.msra.mxu0 %v68
    %441 = vmatprep.subr.mxu0 0.0
    %442 = vmatpush1.msra.mxu0 %v69
    %443 = vmatprep.subr.mxu0 0.0
    %444 = vmatpush1.msra.mxu0 0.0
    %445 = vmatprep.subr.mxu0 0.0
    %446 = vmatpush1.msra.mxu0 0.0
    %447 = vmatprep.subr.mxu0 0.0
    %448 = vmatpush1.msra.mxu0 0.0
    %449 = vmatprep.subr.mxu0 0.0
    %450 = vmatpush1.msra.mxu0 0.0
    %451 = vmatprep.subr.mxu0 0.0
    %452 = vmatpush1.msra.mxu0 0.0
    %453 = vmatprep.subr.mxu0 0.0
    %454 = vmatpush1.msra.mxu0 0.0
    %455 = vmatprep.subr.mxu0 0.0
    %456 = vmatpush1.msra.mxu0 0.0
    %457 = vmatprep.subr.mxu0 0.0
    %458 = vmatpush1.msra.mxu0 0.0
    %459 = vmatprep.subr.mxu0 0.0
    %460 = vmatpush1.msra.mxu0 0.0
    %461 = vmatprep.subr.mxu0 0.0
    %462 = vmatpush1.msra.mxu0 0.0
    %463 = vmatprep.subr.mxu0 0.0
    %464 = vmatpush1.msra.mxu0 0.0
    %465 = vmatprep.subr.mxu0 0.0
    %466 = vmatpush1.msra.mxu0 0.0
    %467 = vmatprep.subr.mxu0 0.0
    %468 = vmatpush1.msra.mxu0 0.0
    %469 = vmatprep.subr.mxu0 0.0
    %470 = vmatpush1.msra.mxu0 0.0
    %471 = vmatprep.subr.mxu0 0.0
    %472 = vmatpush1.msra.mxu0 0.0
    %473 = vmatprep.subr.mxu0 0.0
    %474 = vmatpush1.msra.mxu0 0.0
    %475 = vmatprep.mubr.f32.mxu0 0.0
    %476 = vmatmul.mubr.f32.gmra.mrb[0].mxu0 %v410
    %v477 = vpop.f32.mrb[0].mxu0
    %v478 = vadd.f32 %v74, %v477
    %v479 = vpop.f32.mrb[0].mxu0
    %480 = vdwg.mxu0
    %vm481 = vcmp.gt.f32.partialorder %v478, 20.0
    %v482 = vmin.f32 %v478, 20.0
    %v483 = vmul.f32 %v482, 1.442695
    %v484 = vpow.pop %v483
    %v485 = vadd.f32 %v484, 1.0
    %v486 = vlog2.pop %v485
    %v487 = vmul.f32 %v486, 0.6931472
    %v488 = vmul.f32 -0.5, %v484
    %v489 = vadd.f32 %v488, 1.0
    %v490 = vmul.f32 %v489, %v484
    %v491 = vand.u32 2147483647, %v484
    %vm492 = vcmp.lt.f32.partialorder %v491, 0.0004427343
    %v493 = vsel %vm492, %v490, %v487
    %v494 = vsel %vm481, %v478, %v493
    %v495 = vrot.slane %v494, 4
    %v496 = vadd.f32 %v494, %v495
    %v497 = vrot.slane %v496, 2
    %v498 = vadd.f32 %v496, %v497
    %v499 = vrot.slane %v498, 1
    %v500 = vadd.f32 %v498, %v499
    %v501 = vmul.f32 %v500, %v165
    %v502 = vsub.f32 %v494, %v501
    %v503 = vmul.f32 %v502, %v502
    %v504 = vrot.slane %v503, 4
    %v505 = vadd.f32 %v503, %v504
    %v506 = vrot.slane %v505, 2
    %v507 = vadd.f32 %v505, %v506
    %v508 = vrot.slane %v507, 1
    %v509 = vadd.f32 %v507, %v508
    %v510 = vmul.f32 %v509, %v165
    %v511 = vadd.f32 %v510, 1e-05
    %v512 = vrsqrt.pop %v511
    %v513 = vmul.f32 %v502, %v512
    %v514 = vmul.f32 %v513, %v183
    %v515 = vadd.f32 %v514, %v189
    %v516 = vadd.f32 %v297, %v406
    %v517 = vmul.f32 %v516, 3.0
    %v518 = vadd.f32 %v190, %v517
    %v519 = vadd.f32 %v518, %v515
    %v520 = vmul.f32 %v519, 1.25
    %v521 = vadd.f32 %v53, %v520
    %v522 = vld [vmem:[#allocation2 + $0x86] sm:$0x1]
    %v523 = vlaneseq
    %v524 = vshrl.u32 %v523, 7
    %v525 = vsub.s32 0, %v524
    %v526 = vrot.slane %v522, %v525
    %v527 = vmul.f32 %v521, %v526
    %528 = vadd.xlane.f32.xlu0 %v527
    %v529 = vpop.xlane.xlu0 %528
    %v530 = vld [vmem:[#allocation2 + $0x87] sm:$0x1]
    %v531 = vlaneseq
    %v532 = vshrl.u32 %v531, 7
    %v533 = vsub.s32 0, %v532
    %v534 = vrot.slane %v530, %v533
    %v535 = vadd.f32 %v529, %v534
    %vm536 = vcmask 7168
    %537 = vst.msk [vmem:[%s2] sm:$0xff] %vm536, %v535
    // Predicated region
    $region14: #{neural_ode_forward.1} parent=1 // pred_check
      _
    $region15: #{neural_ode_forward.1} parent=1 // pred_check_branch
      %539 = sbr.rel (0) target = $region17
    $region16: #{neural_ode_forward.1} parent=1 // pred_region
      _
    $region17: #{neural_ode_forward.1} parent=1 // pred_fallthru
      _
    // Predicated region
    $region18: #{neural_ode_forward.1} parent=1 // pred_check
      _
    $region19: #{neural_ode_forward.1} parent=1 // pred_check_branch
      %541 = sbr.rel (0) target = $region21
    $region20: #{neural_ode_forward.1} parent=1 // pred_region
      _
    $region21: #{neural_ode_forward.1} parent=1 // pred_fallthru
      _
    %542 = vsyncpa [#allocation3], 1

</llo_original>
